<compile_context>
chip_gen: v6e
topology: v6e:2x2x1
jax: 0.10.0
libtpu: 0.0.40
codegen_flags: <defaults>
</compile_context>

<pallas_src>
import functools

import jax
import jax.numpy as jnp
from jax import lax
from jax.experimental import pallas as pl
from jax.experimental.pallas import tpu as pltpu


def residual_linear_kernel(x_ref, w_ref, xr_ref, b_ref, o_ref, acc_ref):
    """One (tm, tn) output tile; K-axis accumulation into f32 scratch."""
    k = pl.program_id(2)

    @pl.when(k == 0)
    def _init():
        acc_ref[...] = jnp.zeros_like(acc_ref)

    # x tile: (tm, tk), W tile: (tn, tk) in torch Linear (out, in) layout.
    # Contract both on axis 1  ->  (tm, tn) == x @ W^T, f32 accumulation on MXU.
    acc_ref[...] += lax.dot_general(
        x_ref[...], w_ref[...],
        dimension_numbers=(((1,), (1,)), ((), ())),
        preferred_element_type=jnp.float32,
    )

    @pl.when(k == pl.num_programs(2) - 1)
    def _finalize():
        out = (acc_ref[...]
               + b_ref[...].astype(jnp.float32)            # bias, once per tile
               + xr_ref[...].astype(jnp.float32))          # residual, once per tile
        o_ref[...] = out.astype(o_ref.dtype)


def _pick_tile(dim, target, align):
    """Largest t <= target with dim % t == 0 and t % align == 0 (or t == dim)."""
    if dim <= target:
        return dim
    t = (target // align) * align
    while t >= align:
        if dim % t == 0:
            return t
        t -= align
    return dim  # fall back to full extent (legal: block dim == array dim)


def residual_linear(x, w, b, *, tm=None, tn=None, tk=None):
    """out = x @ w.T + b + x  (PyTorch Linear semantics + residual skip).

    x: (..., H) row-major (H on lanes), w: (H, H) as torch.nn.Linear, b: (H,).
    """
    orig_shape = x.shape
    H = orig_shape[-1]
    x2d = x.reshape(-1, H)
    M = x2d.shape[0]
    assert w.shape == (H, H) and b.shape == (H,)

    # Tile selection (safe defaults; re-derive smaller on v7x's 64 MiB VMEM,
    # larger on v6e's 128 MiB VMEM if desired).
    tm = tm or _pick_tile(M, 256, 8)
    tn = tn or _pick_tile(H, 256, 128)
    tk = tk or _pick_tile(H, 512, 128)
    assert M % tm == 0 and H % tn == 0 and H % tk == 0

    grid = (M // tm, H // tn, H // tk)
    b2 = b.reshape(1, H)
    itemsize = jnp.dtype(x.dtype).itemsize

    cost = pl.CostEstimate(
        flops=2 * M * H * H,
        transcendentals=0,
        bytes_accessed=itemsize * (3 * M * H)             # x (x2) + output
        + jnp.dtype(w.dtype).itemsize * H * H              # weights
        + jnp.dtype(b.dtype).itemsize * H,                 # bias
    )

    out = pl.pallas_call(
        residual_linear_kernel,
        out_shape=jax.ShapeDtypeStruct((M, H), x.dtype),
        grid_spec=pltpu.PrefetchScalarGridSpec(
            num_scalar_prefetch=0,
            grid=grid,
            in_specs=[
                pl.BlockSpec((tm, tk), lambda i, j, k: (i, k)),   # x   (matmul operand)
                pl.BlockSpec((tn, tk), lambda i, j, k: (j, k)),   # W   (out, in), untransposed
                pl.BlockSpec((tm, tn), lambda i, j, k: (i, j)),   # x   (residual tile)
                pl.BlockSpec((1, tn), lambda i, j, k: (0, j)),    # bias
            ],
            out_specs=pl.BlockSpec((tm, tn), lambda i, j, k: (i, j)),
            scratch_shapes=[pltpu.VMEM((tm, tn), jnp.float32)],
        ),
        compiler_params=pltpu.CompilerParams(
            dimension_semantics=("parallel", "parallel", "arbitrary")),
        cost_estimate=cost,
    )(x2d, w, x2d, b2)

    return out.reshape(orig_shape)


if __name__ == "__main__":
    # Small demo shapes; hidden chosen as a multiple of 128 so the output
    # last dim is lane-dense (no masked partial stores).
    batch, seq, hidden = 2, 8, 256
    key = jax.random.PRNGKey(0)
    kx, kw, kb = jax.random.split(key, 3)

    # Deterministic synthetic parameters (no checkpoint).
    x = jax.random.normal(kx, (batch, seq, hidden), dtype=jnp.float32)
    w = jax.random.normal(kw, (hidden, hidden), dtype=jnp.float32) * 0.02
    b = jax.random.normal(kb, (hidden,), dtype=jnp.float32) * 0.02

    # Explicit sub-full tiles so the demo actually exercises the K-accumulator
    # (grid = (1, 2, 2)) and the init/finalize pl.when branches.
    fn = jax.jit(functools.partial(residual_linear, tm=batch * seq, tn=128, tk=128))
    out = jax.block_until_ready(fn(x, w, b))

    # Pure-JAX reference.
    x2d = x.reshape(-1, hidden)
    ref = (x2d @ w.T + b + x2d).reshape(batch, seq, hidden)
    assert out.shape == ref.shape
    assert jnp.allclose(out, ref, atol=1e-4, rtol=1e-4), (
        float(jnp.max(jnp.abs(out - ref))))

    print("KERNEL_OK")
</pallas_src>

<mosaic_0001>
module attributes {stable_mosaic.version = 11 : i64} {
  func.func @residual_linear_kernel(%arg0: i32, %arg1: i32, %arg2: i32, %arg3: memref<16x128xf32, #tpu.memory_space<vmem>>, %arg4: memref<128x128xf32, #tpu.memory_space<vmem>>, %arg5: memref<16x128xf32, #tpu.memory_space<vmem>>, %arg6: memref<1x128xf32, #tpu.memory_space<vmem>>, %arg7: memref<16x128xf32, #tpu.memory_space<vmem>>, %arg8: memref<16x128xf32, #tpu.memory_space<vmem>>) attributes {dimension_semantics = [#tpu.dimension_semantics<parallel>, #tpu.dimension_semantics<parallel>, #tpu.dimension_semantics<arbitrary>], iteration_bounds = array<i64: 1, 2, 2>, scalar_prefetch = 0 : i64, scratch_operands = 1 : i64, tpu.core_type = #tpu.core_type<tc>, window_params = [{transform_indices = @transform_0, window_bounds = array<i64: 16, 128>}, {transform_indices = @transform_1, window_bounds = array<i64: 128, 128>}, {transform_indices = @transform_2, window_bounds = array<i64: 16, 128>}, {transform_indices = @transform_3, window_bounds = array<i64: 1, 128>}, {transform_indices = @transform_4, window_bounds = array<i64: 16, 128>}]} {
    %c0_i32 = arith.constant 0 : i32
    %0 = arith.cmpi eq, %arg2, %c0_i32 : i32
    %1 = arith.extui %0 : i1 to i32
    %c0_i32_0 = arith.constant 0 : i32
    %2 = arith.cmpi ne, %1, %c0_i32_0 : i32
    scf.if %2 {
      %cst_9 = arith.constant 0.000000e+00 : f32
      %12 = vector.broadcast %cst_9 : f32 to vector<16x128xf32>
      %c0_10 = arith.constant 0 : index
      %c0_11 = arith.constant 0 : index
      %13 = vector.load %arg8[%c0_10, %c0_11] : memref<16x128xf32, #tpu.memory_space<vmem>>, vector<16x128xf32>
      tpu.vector_store %arg8[%c0_10, %c0_11], %12 {strides = array<i32>} : memref<16x128xf32, #tpu.memory_space<vmem>>, vector<16x128xf32>,
    } else {
    }
    %c0 = arith.constant 0 : index
    %c0_1 = arith.constant 0 : index
    %3 = vector.load %arg8[%c0, %c0_1] : memref<16x128xf32, #tpu.memory_space<vmem>>, vector<16x128xf32>
    %c0_2 = arith.constant 0 : index
    %c0_3 = arith.constant 0 : index
    %4 = vector.load %arg3[%c0_2, %c0_3] : memref<16x128xf32, #tpu.memory_space<vmem>>, vector<16x128xf32>
    %c0_4 = arith.constant 0 : index
    %c0_5 = arith.constant 0 : index
    %5 = vector.load %arg4[%c0_4, %c0_5] : memref<128x128xf32, #tpu.memory_space<vmem>>, vector<128x128xf32>
    %cst = arith.constant dense<0.000000e+00> : vector<16x128xf32>
    %6 = tpu.matmul %4, %5, %cst {dimension_numbers = #tpu.dot_dimension_numbers<[1], [1], [0], [0], [0, 0, 1, 0], [], []>} : vector<16x128xf32>, vector<128x128xf32>, vector<16x128xf32> -> vector<16x128xf32>
    %7 = arith.addf %3, %6 : vector<16x128xf32>
    %c0_6 = arith.constant 0 : index
    %c0_7 = arith.constant 0 : index
    %8 = vector.load %arg8[%c0_6, %c0_7] : memref<16x128xf32, #tpu.memory_space<vmem>>, vector<16x128xf32>
    tpu.vector_store %arg8[%c0_6, %c0_7], %7 {strides = array<i32>} : memref<16x128xf32, #tpu.memory_space<vmem>>, vector<16x128xf32>,
    %c1_i32 = arith.constant 1 : i32
    %9 = arith.cmpi eq, %arg2, %c1_i32 : i32
    %10 = arith.extui %9 : i1 to i32
    %c0_i32_8 = arith.constant 0 : i32
    %11 = arith.cmpi ne, %10, %c0_i32_8 : i32
    scf.if %11 {
      %c0_9 = arith.constant 0 : index
      %c0_10 = arith.constant 0 : index
      %12 = vector.load %arg8[%c0_9, %c0_10] : memref<16x128xf32, #tpu.memory_space<vmem>>, vector<16x128xf32>
      %c0_11 = arith.constant 0 : index
      %c0_12 = arith.constant 0 : index
      %13 = vector.load %arg6[%c0_11, %c0_12] : memref<1x128xf32, #tpu.memory_space<vmem>>, vector<1x128xf32>
      %14 = vector.broadcast %13 : vector<1x128xf32> to vector<16x128xf32>
      %15 = arith.addf %12, %14 : vector<16x128xf32>
      %c0_13 = arith.constant 0 : index
      %c0_14 = arith.constant 0 : index
      %16 = vector.load %arg5[%c0_13, %c0_14] : memref<16x128xf32, #tpu.memory_space<vmem>>, vector<16x128xf32>
      %17 = arith.addf %15, %16 : vector<16x128xf32>
      %c0_15 = arith.constant 0 : index
      %c0_16 = arith.constant 0 : index
      %18 = vector.load %arg7[%c0_15, %c0_16] : memref<16x128xf32, #tpu.memory_space<vmem>>, vector<16x128xf32>
      tpu.vector_store %arg7[%c0_15, %c0_16], %17 {strides = array<i32>} : memref<16x128xf32, #tpu.memory_space<vmem>>, vector<16x128xf32>,
    } else {
    }
    return
  }
  func.func @transform_0(%arg0: i32, %arg1: i32, %arg2: i32) -> (i32, i32) {
    %c0_i32 = arith.constant 0 : i32
    return %arg0, %arg2 : i32, i32
  }
  func.func @transform_1(%arg0: i32, %arg1: i32, %arg2: i32) -> (i32, i32) {
    %c0_i32 = arith.constant 0 : i32
    return %arg1, %arg2 : i32, i32
  }
  func.func @transform_2(%arg0: i32, %arg1: i32, %arg2: i32) -> (i32, i32) {
    %c0_i32 = arith.constant 0 : i32
    return %arg0, %arg1 : i32, i32
  }
  func.func @transform_3(%arg0: i32, %arg1: i32, %arg2: i32) -> (i32, i32) {
    %c0_i32 = arith.constant 0 : i32
    %c0_i32_0 = arith.constant 0 : i32
    return %c0_i32, %arg1 : i32, i32
  }
  func.func @transform_4(%arg0: i32, %arg1: i32, %arg2: i32) -> (i32, i32) {
    %c0_i32 = arith.constant 0 : i32
    return %arg0, %arg1 : i32, i32
  }
}

</mosaic_0001>

<llo_original>
// kernel: residual_linear.1
$region0: #{residual_linear.1}
  #allocation0 [shape = 'u32[]', space=smem, size = 0x4, offset = 0x4, fixed_abs, tag = 'smem constant byte address 0x4 - core index']
  #allocation1 [shape = 'u32[144,128]{1,0:T(1,128)}', space=vmem, size = 0x12000, scoped, tag = 'internal scratch']
  #allocation2 [shape = 'f32[16,128]{1,0:T(8,128)}', space=vmem, size = 0x2000, scoped, tag = 'scratch operand']
  %s0 = inlined_call_operand.hbm [shape: f32[16,256], index: 0, kind: input, shape index: {}, may-alias: {0,2}]
  %s1 = inlined_call_operand.hbm [shape: f32[256,256], index: 1, kind: input, shape index: {}]
  %s2 = inlined_call_operand.hbm [shape: f32[16,256], index: 2, kind: input, shape index: {}, may-alias: {0,2}]
  %s3 = inlined_call_operand.vmem [shape: f32[1,256], index: 3, kind: input, shape index: {}]
  %s4 = inlined_call_operand.hbm [shape: f32[16,256], index: 4, kind: output, shape index: {}]
  %s5 = sld [smem:[#allocation0]]
  $region69: #{residual_linear.1} parent=0
    _
  %s7 = ssub.s32 1, %s5
  %s8 = scalar_select 0, %s7, %s5
  $region1: #{residual_linear.1} parent=0
    #allocation3 [shape = 'u8[16384]{0}', space=vmem, size = 0x4000, scoped, tag = 'input window, operand 0']
    #allocation4 [shape = 's32[2]{0}', space=sflag, size = 0x8, scoped, tag = 'scoped memory for residual_linear.1']
    #allocation5 [shape = 's32[2]{0}', space=sflag, size = 0x8, scoped, tag = 'scoped memory for residual_linear.1']
    #allocation6 [shape = 'u8[131072]{0}', space=vmem, size = 0x20000, scoped, tag = 'input window, operand 1']
    #allocation7 [shape = 's32[2]{0}', space=sflag, size = 0x8, scoped, tag = 'scoped memory for residual_linear.1']
    #allocation8 [shape = 'u8[16384]{0}', space=vmem, size = 0x4000, scoped, tag = 'input window, operand 2']
    #allocation9 [shape = 'u8[16384]{0}', space=vmem, size = 0x4000, scoped, tag = 'output window, operand 0']
    %9 = vsyncpa [#allocation4], 0
    %s10 = scalar_lea.sflag [#allocation4], 1
    %11 = vsyncpa %s10, 0
    %12 = vsyncpa [#allocation7], 0
    %s13 = scalar_lea.sflag [#allocation7], 1
    %14 = vsyncpa %s13, 0
    %15 = vsyncpa [#allocation5], 0
    %s16 = scalar_lea.sflag [#allocation5], 1
    %17 = vsyncpa %s16, 0
    loop: start=0, step=1, limit=6
    $region2: #{residual_linear.1} parent=1 // loop_pre_header
      _
    $region3: #{residual_linear.1} parent=1 // loop_header
      %s19 = sphi 0, %s23
      %p20 = scmp.ge.s32.totalorder %s19, 6
      %s26 = sphi 0, %s45
      %s27 = sphi 0, %s41
      %s28 = sphi 0, %s37
      %s29 = sphi 0, %s26
      %s30 = sphi 0, %s27
      %s31 = sphi 0, %s28
      %s32 = sphi 0, %s29
      %s33 = sphi 0, %s30
      %s34 = sphi 0, %s31
      %s50 = sphi 0, %s52
      %s53 = sphi 0, %s50
      %s54 = sphi 0, %s53
      %s70 = sphi 0, %s54
      %s78 = sphi 0, %s80
      %s81 = sphi 0, %s78
      %s82 = sphi 0, %s81
      %s98 = sphi 0, %s82
      %s106 = sphi 0, %s108
      %s109 = sphi 0, %s106
      %s110 = sphi 0, %s109
      %s126 = sphi 0, %s110
      %s132 = sphi 0, %s134
      %s135 = sphi 0, %s132
      %s136 = sphi 0, %s135
      %s152 = sphi 0, %s136
      %s160 = sphi 0, %s162
      %s163 = sphi 0, %s160
      %s164 = sphi 0, %s163
      %s180 = sphi 0, %s164
    $region4: #{residual_linear.1} parent=1 // loop_header_branch
      %22 = sbr.rel (%p20) target = $region8
    $region5: #{residual_linear.1} parent=1 // loop_body
      %s24 = ssub.s32 %s19, 1
      %s25 = ssub.s32 %s19, 2
      %s35 = sadd.s32 1, %s28
      %p36 = scmp.ge.s32.totalorder %s35, 2
      %s37 = scalar_select %p36, 0, %s35
      %s38 = sadd.s32 1, %s27
      %s39 = scalar_select %p36, %s38, %s27
      %p40 = scmp.ge.s32.totalorder %s39, 2
      %s41 = scalar_select %p40, 0, %s39
      %s42 = sadd.s32 1, %s26
      %s43 = scalar_select %p40, %s42, %s26
      %p44 = scmp.ge.s32.totalorder %s43, 1
      %s45 = scalar_select %p44, 0, %s43
      %s46 = ssub.s32 %s26, %s45
      %s47 = ssub.s32 %s28, %s37
      %s48 = sor.u32 %s46, %s47
      %p49 = scmp.eq.s32.totalorder %s48, 0
      %s51 = sadd.s32 %s50, 1
      %s52 = scalar_select %p49, %s50, %s51
      %p55 = pneg %p49
      %p56 = scmp.eq.s32.totalorder %s19, 3
      %p57 = por %p55, %p56
      %p58 = scmp.ne.s32.totalorder %s50, %s53
      %p59 = scmp.eq.s32.totalorder %s19, 0
      %p60 = por %p58, %p59
      %p61 = scmp.ne.s32.totalorder %s50, %s53
      %p62 = scmp.eq.s32.totalorder %s24, 3
      %p63 = por %p61, %p62
      %p64 = scmp.ne.s32.totalorder %s53, %s54
      %p65 = scmp.eq.s32.totalorder %s24, 0
      %p66 = por %p64, %p65
      %p67 = scmp.ne.s32.totalorder %s53, %s54
      %p68 = scmp.eq.s32.totalorder %s25, 3
      %p69 = por %p67, %p68
      %p71 = scmp.ne.s32.totalorder %s54, %s70
      %p72 = scmp.eq.s32.totalorder %s25, 0
      %p73 = por %p71, %p72
      %s74 = ssub.s32 %s27, %s41
      %s75 = ssub.s32 %s28, %s37
      %s76 = sor.u32 %s74, %s75
      %p77 = scmp.eq.s32.totalorder %s76, 0
      %s79 = sadd.s32 %s78, 1
      %s80 = scalar_select %p77, %s78, %s79
      %p83 = pneg %p77
      %p84 = scmp.eq.s32.totalorder %s19, 3
      %p85 = por %p83, %p84
      %p86 = scmp.ne.s32.totalorder %s78, %s81
      %p87 = scmp.eq.s32.totalorder %s19, 0
      %p88 = por %p86, %p87
      %p89 = scmp.ne.s32.totalorder %s78, %s81
      %p90 = scmp.eq.s32.totalorder %s24, 3
      %p91 = por %p89, %p90
      %p92 = scmp.ne.s32.totalorder %s81, %s82
      %p93 = scmp.eq.s32.totalorder %s24, 0
      %p94 = por %p92, %p93
      %p95 = scmp.ne.s32.totalorder %s81, %s82
      %p96 = scmp.eq.s32.totalorder %s25, 3
      %p97 = por %p95, %p96
      %p99 = scmp.ne.s32.totalorder %s82, %s98
      %p100 = scmp.eq.s32.totalorder %s25, 0
      %p101 = por %p99, %p100
      %s102 = ssub.s32 %s26, %s45
      %s103 = ssub.s32 %s27, %s41
      %s104 = sor.u32 %s102, %s103
      %p105 = scmp.eq.s32.totalorder %s104, 0
      %s107 = sadd.s32 %s106, 1
      %s108 = scalar_select %p105, %s106, %s107
      %p111 = pneg %p105
      %p112 = scmp.eq.s32.totalorder %s19, 3
      %p113 = por %p111, %p112
      %p114 = scmp.ne.s32.totalorder %s106, %s109
      %p115 = scmp.eq.s32.totalorder %s19, 0
      %p116 = por %p114, %p115
      %p117 = scmp.ne.s32.totalorder %s106, %s109
      %p118 = scmp.eq.s32.totalorder %s24, 3
      %p119 = por %p117, %p118
      %p120 = scmp.ne.s32.totalorder %s109, %s110
      %p121 = scmp.eq.s32.totalorder %s24, 0
      %p122 = por %p120, %p121
      %p123 = scmp.ne.s32.totalorder %s109, %s110
      %p124 = scmp.eq.s32.totalorder %s25, 3
      %p125 = por %p123, %p124
      %p127 = scmp.ne.s32.totalorder %s110, %s126
      %p128 = scmp.eq.s32.totalorder %s25, 0
      %p129 = por %p127, %p128
      %s130 = ssub.s32 %s27, %s41
      %p131 = scmp.eq.s32.totalorder %s130, 0
      %s133 = sadd.s32 %s132, 1
      %s134 = scalar_select %p131, %s132, %s133
      %p137 = pneg %p131
      %p138 = scmp.eq.s32.totalorder %s19, 3
      %p139 = por %p137, %p138
      %p140 = scmp.ne.s32.totalorder %s132, %s135
      %p141 = scmp.eq.s32.totalorder %s19, 0
      %p142 = por %p140, %p141
      %p143 = scmp.ne.s32.totalorder %s132, %s135
      %p144 = scmp.eq.s32.totalorder %s24, 3
      %p145 = por %p143, %p144
      %p146 = scmp.ne.s32.totalorder %s135, %s136
      %p147 = scmp.eq.s32.totalorder %s24, 0
      %p148 = por %p146, %p147
      %p149 = scmp.ne.s32.totalorder %s135, %s136
      %p150 = scmp.eq.s32.totalorder %s25, 3
      %p151 = por %p149, %p150
      %p153 = scmp.ne.s32.totalorder %s136, %s152
      %p154 = scmp.eq.s32.totalorder %s25, 0
      %p155 = por %p153, %p154
      %s156 = ssub.s32 %s26, %s45
      %s157 = ssub.s32 %s27, %s41
      %s158 = sor.u32 %s156, %s157
      %p159 = scmp.eq.s32.totalorder %s158, 0
      %s161 = sadd.s32 %s160, 1
      %s162 = scalar_select %p159, %s160, %s161
      %p165 = pneg %p159
      %p166 = scmp.eq.s32.totalorder %s19, 3
      %p167 = por %p165, %p166
      %p168 = scmp.ne.s32.totalorder %s160, %s163
      %p169 = scmp.eq.s32.totalorder %s19, 0
      %p170 = por %p168, %p169
      %p171 = scmp.ne.s32.totalorder %s160, %s163
      %p172 = scmp.eq.s32.totalorder %s24, 3
      %p173 = por %p171, %p172
      %p174 = scmp.ne.s32.totalorder %s163, %s164
      %p175 = scmp.eq.s32.totalorder %s24, 0
      %p176 = por %p174, %p175
      %p177 = scmp.ne.s32.totalorder %s163, %s164
      %p178 = scmp.eq.s32.totalorder %s25, 3
      %p179 = por %p177, %p178
      %p181 = scmp.ne.s32.totalorder %s164, %s180
      %p182 = scmp.eq.s32.totalorder %s25, 0
      %p183 = por %p181, %p182
      %p184 = scmp.le.s32.totalorder 1, %s19
      %p185 = scmp.lt.s32.totalorder %s19, 5
      %p186 = pnand %p184, %p185
      %p187 = pneg %p186
      // Predicated region
      $region9: #{residual_linear.1} parent=5 // pred_check
        _
      $region10: #{residual_linear.1} parent=5 // pred_check_branch
        %189 = sbr.rel (%p186) target = $region12
      $region11: #{residual_linear.1} parent=5 // pred_region
        %s190 = ssub.s32 %s19, 1
      $region12: #{residual_linear.1} parent=5 // pred_fallthru
        _
      %p191 = scmp.lt.s32.totalorder %s19, 4
      // Predicated region
      $region13: #{residual_linear.1} parent=5 // pred_check
        %p192 = pneg %p191
      $region14: #{residual_linear.1} parent=5 // pred_check_branch
        %194 = sbr.rel (%p192) target = $region16
      $region15: #{residual_linear.1} parent=5 // pred_region
        // Predicated region
        $region17: #{residual_linear.1} parent=15 // pred_check
          %p195 = pneg %p60
        $region18: #{residual_linear.1} parent=15 // pred_check_branch
          %197 = sbr.rel (%p195) target = $region20
        $region19: #{residual_linear.1} parent=15 // pred_region
          %s198 = sand.u32 %s50, 1
          %s199 = scalar_lea.sflag [#allocation4], %s198
          %s200 = sand.u32 %s50, 1
          %s201 = smul.addr %s200, 16
          %s202 = scalar_lea.vmem [#allocation3], %s201
          %s203 = smul.u32 2, %s26
          %s205 = ssub.s32 256, 256
          %206 = vsyncadd %s199, %s205
          %s207 = smul.addr %s203, 2
          %s208 = sadd.s32 %s28, %s207
          %s209 = smul.addr %s208, 128
          %s210 = scalar_lea.hbm %s0, %s209
          %s211 = sshll.u32 %s202, 4
          %s212 = int_to_ptr.vmem [resolvable:$true] %s211
          %217 = dma.hbm_to_vmem [thread:$0]  %s210, 256, %s212, %s199, 256, 128, 8
        $region20: #{residual_linear.1} parent=15 // pred_fallthru
          _
        // Predicated region
        $region21: #{residual_linear.1} parent=15 // pred_check
          %p218 = pneg %p88
        $region22: #{residual_linear.1} parent=15 // pred_check_branch
          %220 = sbr.rel (%p218) target = $region24
        $region23: #{residual_linear.1} parent=15 // pred_region
          %s221 = sand.u32 %s19, 1
          %s222 = scalar_lea.sflag [#allocation7], %s221
          %s223 = sand.u32 %s78, 1
          %s224 = smul.addr %s223, 128
          %s225 = scalar_lea.vmem [#allocation6], %s224
          %s226 = smul.u32 16, %s27
          %s228 = ssub.s32 2048, 2048
          %229 = vsyncadd %s222, %s228
          %s230 = smul.addr %s226, 2
          %s231 = sadd.s32 %s28, %s230
          %s232 = smul.addr %s231, 128
          %s233 = scalar_lea.hbm %s1, %s232
          %s234 = sshll.u32 %s225, 4
          %s235 = int_to_ptr.vmem [resolvable:$true] %s234
          %240 = dma.hbm_to_vmem [thread:$0]  %s233, 2048, %s235, %s222, 256, 128, 8
        $region24: #{residual_linear.1} parent=15 // pred_fallthru
          _
        // Predicated region
        $region25: #{residual_linear.1} parent=15 // pred_check
          %p241 = pneg %p116
        $region26: #{residual_linear.1} parent=15 // pred_check_branch
          %243 = sbr.rel (%p241) target = $region28
        $region27: #{residual_linear.1} parent=15 // pred_region
          %s244 = sand.u32 %s19, 1
          %s245 = scalar_lea.sflag [#allocation7], %s244
          %s246 = sand.u32 %s106, 1
          %s247 = smul.addr %s246, 16
          %s248 = scalar_lea.vmem [#allocation8], %s247
          %s249 = smul.u32 2, %s26
          %s251 = ssub.s32 256, 256
          %252 = vsyncadd %s245, %s251
          %s253 = smul.addr %s249, 2
          %s254 = sadd.s32 %s27, %s253
          %s255 = smul.addr %s254, 128
          %s256 = scalar_lea.hbm %s2, %s255
          %s257 = sshll.u32 %s248, 4
          %s258 = int_to_ptr.vmem [resolvable:$true] %s257
          %263 = dma.hbm_to_vmem [thread:$0]  %s256, 256, %s258, %s245, 256, 128, 8
        $region28: #{residual_linear.1} parent=15 // pred_fallthru
          _
        // Predicated region
        $region29: #{residual_linear.1} parent=15 // pred_check
          %p264 = pneg %p142
        $region30: #{residual_linear.1} parent=15 // pred_check_branch
          %266 = sbr.rel (%p264) target = $region32
        $region31: #{residual_linear.1} parent=15 // pred_region
          %p267 = scmp.lt.s32.totalorder %s27, 1
          %s268 = scalar_select %p267, %s27, 1
          %s269 = scalar_lea.vmem %s3, %s268
        $region32: #{residual_linear.1} parent=15 // pred_fallthru
          _
      $region16: #{residual_linear.1} parent=5 // pred_fallthru
        _
      %p270 = scmp.le.s32.totalorder 1, %s19
      %p271 = scmp.lt.s32.totalorder %s19, 5
      %p272 = pnand %p270, %p271
      %p273 = pneg %p272
      // Predicated region
      $region33: #{residual_linear.1} parent=5 // pred_check
        _
      $region34: #{residual_linear.1} parent=5 // pred_check_branch
        %275 = sbr.rel (%p272) target = $region36
      $region35: #{residual_linear.1} parent=5 // pred_region
        %s276 = ssub.s32 %s19, 1
        %s277 = sand.u32 %s53, 1
        %s278 = scalar_lea.sflag [#allocation4], %s277
        %s279 = sand.u32 %s53, 1
        %s280 = smul.addr %s279, 16
        %s281 = scalar_lea.vmem [#allocation3], %s280
        // Predicated region
        $region37: #{residual_linear.1} parent=35 // pred_check
          %p282 = pneg %p66
        $region38: #{residual_linear.1} parent=35 // pred_check_branch
          %284 = sbr.rel (%p282) target = $region40
        $region39: #{residual_linear.1} parent=35 // pred_region
          %285 = dma.done %s278, 256
        $region40: #{residual_linear.1} parent=35 // pred_fallthru
          _
        %s286 = sand.u32 %s24, 1
        %s287 = scalar_lea.sflag [#allocation7], %s286
        %s288 = sand.u32 %s81, 1
        %s289 = smul.addr %s288, 128
        %s290 = scalar_lea.vmem [#allocation6], %s289
        // Predicated region
        $region41: #{residual_linear.1} parent=35 // pred_check
          %p291 = pneg %p94
        $region42: #{residual_linear.1} parent=35 // pred_check_branch
          %293 = sbr.rel (%p291) target = $region44
        $region43: #{residual_linear.1} parent=35 // pred_region
          %294 = dma.done %s287, 2048
        $region44: #{residual_linear.1} parent=35 // pred_fallthru
          _
        %s295 = sand.u32 %s24, 1
        %s296 = scalar_lea.sflag [#allocation7], %s295
        %s297 = sand.u32 %s109, 1
        %s298 = smul.addr %s297, 16
        %s299 = scalar_lea.vmem [#allocation8], %s298
        // Predicated region
        $region45: #{residual_linear.1} parent=35 // pred_check
          %p300 = pneg %p122
        $region46: #{residual_linear.1} parent=35 // pred_check_branch
          %302 = sbr.rel (%p300) target = $region48
        $region47: #{residual_linear.1} parent=35 // pred_region
          %303 = dma.done %s296, 256
        $region48: #{residual_linear.1} parent=35 // pred_fallthru
          _
        %s304 = sand.u32 %s53, 1
        %s305 = scalar_lea.sflag [#allocation4], %s304
        %s306 = sand.u32 %s53, 1
        %s307 = smul.addr %s306, 16
        %s308 = scalar_lea.vmem [#allocation3], %s307
        %p309 = pneg %p66
        %p310 = pneg %p63
        %s311 = sand.u32 %s24, 1
        %s312 = scalar_lea.sflag [#allocation7], %s311
        %s313 = sand.u32 %s81, 1
        %s314 = smul.addr %s313, 128
        %s315 = scalar_lea.vmem [#allocation6], %s314
        %p316 = pneg %p94
        %p317 = pneg %p91
        %s318 = sand.u32 %s24, 1
        %s319 = scalar_lea.sflag [#allocation7], %s318
        %s320 = sand.u32 %s109, 1
        %s321 = smul.addr %s320, 16
        %s322 = scalar_lea.vmem [#allocation8], %s321
        %p323 = pneg %p122
        %p324 = pneg %p119
        %p325 = scmp.lt.s32.totalorder %s30, 1
        %s326 = scalar_select %p325, %s30, 1
        %s327 = scalar_lea.vmem %s3, %s326
        %p328 = pneg %p148
        %p329 = pneg %p145
        %p330 = pneg %p176
        %p331 = pneg %p173
        %s332 = sand.u32 %s163, 1
        %s333 = scalar_lea.sflag [#allocation5], %s332
        %s334 = sand.u32 %s163, 1
        %s335 = smul.addr %s334, 16
        %s336 = scalar_lea.vmem [#allocation9], %s335
        %s337 = smul.u32 2, %s29
        %s338 = smul.u32 16, %s30
        %s339 = smul.u32 2, %s29
        %p340 = scmp.lt.s32.totalorder %s30, 1
        %s341 = scalar_select %p340, %s30, 1
        %s342 = scalar_lea.vmem %s3, %s341
        %s343 = smul.u32 2, %s29
        %p344 = scmp.eq.s32.totalorder %s31, 0
        // Predicated region
        $region49: #{residual_linear.1} parent=35 // pred_check
          %p345 = pneg %p344
        $region50: #{residual_linear.1} parent=35 // pred_check_branch
          %347 = sbr.rel (%p345) target = $region52
        $region51: #{residual_linear.1} parent=35 // pred_region
          %348 = vst [vmem:[#allocation2] sm:$0xff] 0.0
          %349 = vst [vmem:[#allocation2 + $0x8] sm:$0xff] 0.0
        $region52: #{residual_linear.1} parent=35 // pred_fallthru
          _
        %v350 = vld [vmem:[#allocation2] sm:$0xff]
        %v351 = vld [vmem:[#allocation2 + $0x8] sm:$0xff]
        %v352 = vld [vmem:[%s281] sm:$0xff]
        %v353 = vld [vmem:[%s281 + $0x8] sm:$0xff]
        %v354 = vld [vmem:[%s290] sm:$0xff]
        %v355 = vld [vmem:[%s290 + $0x8] sm:$0xff]
        %v356 = vld [vmem:[%s290 + $0x10] sm:$0xff]
        %v357 = vld [vmem:[%s290 + $0x18] sm:$0xff]
        %v358 = vld [vmem:[%s290 + $0x20] sm:$0xff]
        %v359 = vld [vmem:[%s290 + $0x28] sm:$0xff]
        %v360 = vld [vmem:[%s290 + $0x30] sm:$0xff]
        %v361 = vld [vmem:[%s290 + $0x38] sm:$0xff]
        %v362 = vld [vmem:[%s290 + $0x40] sm:$0xff]
        %v363 = vld [vmem:[%s290 + $0x48] sm:$0xff]
        %v364 = vld [vmem:[%s290 + $0x50] sm:$0xff]
        %v365 = vld [vmem:[%s290 + $0x58] sm:$0xff]
        %v366 = vld [vmem:[%s290 + $0x60] sm:$0xff]
        %v367 = vld [vmem:[%s290 + $0x68] sm:$0xff]
        %v368 = vld [vmem:[%s290 + $0x70] sm:$0xff]
        %v369 = vld [vmem:[%s290 + $0x78] sm:$0xff]
        %370 = vmatprep.subr.mxu0 0.0
        %371 = vmatpush1.xpose.msra.mxu0 %v369
        %372 = vmatprep.subr.mxu0 0.0
        %373 = vmatpush1.xpose.msra.mxu0 %v368
        %374 = vmatprep.subr.mxu0 0.0
        %375 = vmatpush1.xpose.msra.mxu0 %v367
        %376 = vmatprep.subr.mxu0 0.0
        %377 = vmatpush1.xpose.msra.mxu0 %v366
        %378 = vmatprep.subr.mxu0 0.0
        %379 = vmatpush1.xpose.msra.mxu0 %v365
        %380 = vmatprep.subr.mxu0 0.0
        %381 = vmatpush1.xpose.msra.mxu0 %v364
        %382 = vmatprep.subr.mxu0 0.0
        %383 = vmatpush1.xpose.msra.mxu0 %v363
        %384 = vmatprep.subr.mxu0 0.0
        %385 = vmatpush1.xpose.msra.mxu0 %v362
        %386 = vmatprep.subr.mxu0 0.0
        %387 = vmatpush1.xpose.msra.mxu0 %v361
        %388 = vmatprep.subr.mxu0 0.0
        %389 = vmatpush1.xpose.msra.mxu0 %v360
        %390 = vmatprep.subr.mxu0 0.0
        %391 = vmatpush1.xpose.msra.mxu0 %v359
        %392 = vmatprep.subr.mxu0 0.0
        %393 = vmatpush1.xpose.msra.mxu0 %v358
        %394 = vmatprep.subr.mxu0 0.0
        %395 = vmatpush1.xpose.msra.mxu0 %v357
        %396 = vmatprep.subr.mxu0 0.0
        %397 = vmatpush1.xpose.msra.mxu0 %v356
        %398 = vmatprep.subr.mxu0 0.0
        %399 = vmatpush1.xpose.msra.mxu0 %v355
        %400 = vmatprep.subr.mxu0 0.0
        %401 = vmatpush1.xpose.msra.mxu0 %v354
        %402 = vmatprep.subr.mxu0 0.0
        %403 = vmatpush2.xpose.msra.mxu0 0.0
        %404 = vmatprep.subr.mxu0 0.0
        %405 = vmatpush2.xpose.msra.mxu0 0.0
        %406 = vmatprep.subr.mxu0 0.0
        %407 = vmatpush2.xpose.msra.mxu0 0.0
        %408 = vmatprep.subr.mxu0 0.0
        %409 = vmatpush2.xpose.msra.mxu0 0.0
        %410 = vmatprep.subr.mxu0 0.0
        %411 = vmatpush2.xpose.msra.mxu0 0.0
        %412 = vmatprep.subr.mxu0 0.0
        %413 = vmatpush2.xpose.msra.mxu0 0.0
        %414 = vmatprep.subr.mxu0 0.0
        %415 = vmatpush2.xpose.msra.mxu0 0.0
        %416 = vmatprep.subr.mxu0 0.0
        %417 = vmatpush2.xpose.msra.mxu0 0.0
        %418 = vmatprep.subr.mxu0 0.0
        %419 = vmatpush2.xpose.msra.mxu0 0.0
        %420 = vmatprep.subr.mxu0 0.0
        %421 = vmatpush2.xpose.msra.mxu0 0.0
        %422 = vmatprep.subr.mxu0 0.0
        %423 = vmatpush2.xpose.msra.mxu0 0.0
        %424 = vmatprep.subr.mxu0 0.0
        %425 = vmatpush2.xpose.msra.mxu0 0.0
        %426 = vmatprep.subr.mxu0 0.0
        %427 = vmatpush2.xpose.msra.mxu0 0.0
        %428 = vmatprep.subr.mxu0 0.0
        %429 = vmatpush2.xpose.msra.mxu0 0.0
        %430 = vmatprep.subr.mxu0 0.0
        %431 = vmatpush2.xpose.msra.mxu0 0.0
        %432 = vmatprep.subr.mxu0 0.0
        %433 = vmatpush2.xpose.msra.mxu0 0.0
        %434 = vmatprep.mubr.f32.mxu0 0.0
        %435 = vmatmul.mubr.f32.gmra.mxu0 %v352
        %v436 = vpop.f32.mrf.mxu0
        %v437 = vadd.f32 0.0, %v436
        %v438 = vpop.f32.mrf.mxu0
        %439 = vmatprep.mubr.f32.mxu0 0.0
        %440 = vmatmul.mubr.f32.gmra.mxu0 %v353
        %v441 = vpop.f32.mrf.mxu0
        %v442 = vadd.f32 0.0, %v441
        %v443 = vpop.f32.mrf.mxu0
        %444 = vdwg.mxu0
        %v445 = vadd.f32 %v350, %v437
        %v446 = vadd.f32 %v351, %v442
        %447 = vst [vmem:[#allocation2] sm:$0xff] %v445
        %448 = vst [vmem:[#allocation2 + $0x8] sm:$0xff] %v446
        %p449 = scmp.eq.s32.totalorder %s31, 1
        // Predicated region
        $region53: #{residual_linear.1} parent=35 // pred_check
          %p450 = pneg %p449
        $region54: #{residual_linear.1} parent=35 // pred_check_branch
          %452 = sbr.rel (%p450) target = $region56
        $region55: #{residual_linear.1} parent=35 // pred_region
          %v453 = vld [vmem:[#allocation2] sm:$0xff]
          %v454 = vld [vmem:[#allocation2 + $0x8] sm:$0xff]
          %v455 = vld [vmem:[%s342] sm:$0x1]
          %v457 = vlaneseq
          %v458 = vshrl.u32 %v457, 7
          %v459 = vsub.s32 0, %v458
          %v460 = vrot.slane %v455, %v459
          %v462 = vadd.f32 %v453, %v460
          %v463 = vadd.f32 %v454, %v460
          %v464 = vld [vmem:[%s299] sm:$0xff]
          %v465 = vld [vmem:[%s299 + $0x8] sm:$0xff]
          %v466 = vadd.f32 %v462, %v464
          %v467 = vadd.f32 %v463, %v465
          %468 = vst [vmem:[%s336] sm:$0xff] %v466
          %469 = vst [vmem:[%s336 + $0x8] sm:$0xff] %v467
        $region56: #{residual_linear.1} parent=35 // pred_fallthru
          _
        %s470 = sand.u32 %s163, 1
        %s471 = scalar_lea.sflag [#allocation5], %s470
        %s472 = sand.u32 %s163, 1
        %s473 = smul.addr %s472, 16
        %s474 = scalar_lea.vmem [#allocation9], %s473
        // Predicated region
        $region57: #{residual_linear.1} parent=35 // pred_check
          %p475 = pneg %p173
        $region58: #{residual_linear.1} parent=35 // pred_check_branch
          %477 = sbr.rel (%p475) target = $region60
        $region59: #{residual_linear.1} parent=35 // pred_region
          %s478 = smul.u32 2, %s29
          %s480 = ssub.s32 256, 256
          %481 = vsyncadd %s471, %s480
          %s482 = smul.addr %s478, 2
          %s483 = sadd.s32 %s30, %s482
          %s484 = smul.addr %s483, 128
          %s485 = scalar_lea.hbm %s4, %s484
          %s486 = sshll.u32 %s474, 4
          %s487 = int_to_ptr.vmem [resolvable:$true] %s486
          %492 = dma.vmem_to_hbm [thread:$0]  %s487, 256, %s485, %s471, 128, 256, 8
        $region60: #{residual_linear.1} parent=35 // pred_fallthru
          _
      $region36: #{residual_linear.1} parent=5 // pred_fallthru
        _
      %p493 = scmp.le.s32.totalorder 2, %s19
      // Predicated region
      $region61: #{residual_linear.1} parent=5 // pred_check
        %p494 = pneg %p493
      $region62: #{residual_linear.1} parent=5 // pred_check_branch
        %496 = sbr.rel (%p494) target = $region64
      $region63: #{residual_linear.1} parent=5 // pred_region
        %s497 = ssub.s32 %s19, 2
        // Predicated region
        $region65: #{residual_linear.1} parent=63 // pred_check
          %p498 = pneg %p179
        $region66: #{residual_linear.1} parent=63 // pred_check_branch
          %500 = sbr.rel (%p498) target = $region68
        $region67: #{residual_linear.1} parent=63 // pred_region
          %s501 = sand.u32 %s164, 1
          %s502 = scalar_lea.sflag [#allocation5], %s501
          %s503 = sand.u32 %s164, 1
          %s504 = smul.addr %s503, 16
          %s505 = scalar_lea.vmem [#allocation9], %s504
          %506 = dma.done %s502, 256
        $region68: #{residual_linear.1} parent=63 // pred_fallthru
          _
      $region64: #{residual_linear.1} parent=5 // pred_fallthru
        _
    $region6: #{residual_linear.1} parent=1 // loop_footer
      %s23 = sadd.s32 1, %s19
    $region7: #{residual_linear.1} parent=1 // loop_footer_branch
      %18 = sbr.rel target = $region3
    $region8: #{residual_linear.1} parent=1 // loop_exit
      _
    %507 = vsyncpa [#allocation4], 1
    %s508 = scalar_lea.sflag [#allocation4], 1
    %509 = vsyncpa %s508, 1
    %510 = vsyncpa [#allocation7], 1
    %s511 = scalar_lea.sflag [#allocation7], 1
    %512 = vsyncpa %s511, 1
    %513 = vsyncpa [#allocation5], 1
    %s514 = scalar_lea.sflag [#allocation5], 1
    %515 = vsyncpa %s514, 1

</llo_original>
